<compile_context>
chip_gen: v7x
topology: tpu7x:2x2x1
jax: 0.10.0
libtpu: 0.0.40
codegen_flags: <defaults>
</compile_context>

<pallas_src>
import functools

import jax
import jax.numpy as jnp
from jax.experimental import pallas as pl
from jax.experimental.pallas import tpu as pltpu


def _round_up(x, m):
    return ((x + m - 1) // m) * m


def _maxout_kernel(x_ref, w_ref, b_ref, o_ref, *, pool_size, tile_n):
    # x_ref: (tile_m, d_in)                 input row tile (f32 or bf16)
    # w_ref: (1, d_in, pool_size * tile_n)  fused wide weight block for this N-tile
    # b_ref: (1, 1, pool_size * tile_n)     fused bias block (f32)
    # o_ref: (tile_m, tile_n)               output tile
    x = x_ref[...]
    w = w_ref[0]                            # (d_in, pool*tile_n)

    # One wide-N matmul on the MXU, accumulate in f32.
    y = jnp.dot(x, w, preferred_element_type=jnp.float32)      # (tile_m, pool*tile_n)
    y = y + b_ref[0].astype(jnp.float32)                        # broadcast (1, pool*tile_n)

    # Max over pool slots = max over lane-aligned column blocks (tile_n is a multiple of 128).
    acc = y[:, 0:tile_n]
    for p in range(1, pool_size):
        acc = jnp.maximum(acc, y[:, p * tile_n:(p + 1) * tile_n])

    o_ref[...] = acc.astype(o_ref.dtype)


def _prep_params(weight, bias, d_out, pool_size, tile_n, n_tiles):
    """Rearrange W:(d_out*pool, d_in), b:(d_out*pool,) into fused, N-tiled layouts.

    w3[t, k, p*tile_n + c] = weight[(t*tile_n + c)*pool_size + p, k]
    b3[t, 0, p*tile_n + c] = bias  [(t*tile_n + c)*pool_size + p]
    so kernel column (p*tile_n + c) of N-tile t reproduces linear feature j*pool+p
    with j = t*tile_n + c, matching PyTorch's view(..., d_out, pool).max(-1).
    """
    d_in = weight.shape[1]
    n_pad = n_tiles * tile_n - d_out

    wt = weight.reshape(d_out, pool_size, d_in)
    wt = jnp.pad(wt, ((0, n_pad), (0, 0), (0, 0)))
    wt = wt.reshape(n_tiles, tile_n, pool_size, d_in)           # [t, c, p, k]
    w3 = wt.transpose(0, 3, 2, 1).reshape(n_tiles, d_in, pool_size * tile_n)

    bt = bias.reshape(d_out, pool_size)
    bt = jnp.pad(bt, ((0, n_pad), (0, 0)))
    b3 = (bt.reshape(n_tiles, tile_n, pool_size)
            .transpose(0, 2, 1)
            .reshape(n_tiles, 1, pool_size * tile_n)).astype(jnp.float32)
    return w3, b3


def maxout_pallas(x, weight, bias, d_out, pool_size, *,
                  tile_m=256, tile_n=None, compute_dtype=None):
    """x: (..., d_in); weight: (d_out*pool_size, d_in); bias: (d_out*pool_size,)."""
    d_in = x.shape[-1]
    lead_shape = x.shape[:-1]
    out_dtype = x.dtype

    # --- N tiling (lane-aligned) ---
    if tile_n is None:
        tile_n = min(_round_up(d_out, 128), 512)
    else:
        tile_n = _round_up(tile_n, 128)
    n_tiles = pl.cdiv(d_out, tile_n)
    n_cols_pad = n_tiles * tile_n
    wide_n = pool_size * tile_n

    # --- M tiling: big tiles for MXU rows, pad ragged M instead of asserting ---
    x2 = x.reshape(-1, d_in)
    M = x2.shape[0]
    tile_m = max(8, _round_up(tile_m, 8))
    tile_m = min(tile_m, _round_up(M, 8))      # don't over-pad tiny inputs
    M_pad = _round_up(M, tile_m)
    if M_pad != M:
        x2 = jnp.pad(x2, ((0, M_pad - M), (0, 0)))

    # --- parameter rearrangement (plain-JAX glue) ---
    w3, b3 = _prep_params(weight, bias, d_out, pool_size, tile_n, n_tiles)
    if compute_dtype is not None:
        x2 = x2.astype(compute_dtype)
        w3 = w3.astype(compute_dtype)

    # --- VMEM budget (portable across v5e / v6e / v7x) ---
    in_item = jnp.dtype(x2.dtype).itemsize
    w_item = jnp.dtype(w3.dtype).itemsize
    out_item = jnp.dtype(out_dtype).itemsize
    est = (2 * tile_m * d_in * in_item          # double-buffered x tile
           + 2 * tile_m * tile_n * out_item     # double-buffered out tile
           + 2 * d_in * wide_n * w_item         # weight block
           + 2 * wide_n * 4                     # bias block
           + tile_m * wide_n * 4                # wide f32 matmul result
           + tile_m * tile_n * 4)               # max accumulator
    vmem_limit = int(min(64 * 1024 * 1024, max(32 * 1024 * 1024, 2 * est)))

    kernel = functools.partial(_maxout_kernel, pool_size=pool_size, tile_n=tile_n)

    out = pl.pallas_call(
        kernel,
        out_shape=jax.ShapeDtypeStruct((M_pad, n_cols_pad), out_dtype),
        grid_spec=pltpu.PrefetchScalarGridSpec(
            num_scalar_prefetch=0,
            grid=(M_pad // tile_m, n_tiles),
            in_specs=[
                pl.BlockSpec((tile_m, d_in), lambda i, j: (i, 0)),
                pl.BlockSpec((1, d_in, wide_n), lambda i, j: (j, 0, 0)),
                pl.BlockSpec((1, 1, wide_n), lambda i, j: (j, 0, 0)),
            ],
            out_specs=pl.BlockSpec((tile_m, tile_n), lambda i, j: (i, j)),
        ),
        compiler_params=pltpu.CompilerParams(
            dimension_semantics=("parallel", "parallel"),
            vmem_limit_bytes=vmem_limit,
        ),
    )(x2, w3, b3)

    out = out[:M, :d_out]
    return out.reshape(*lead_shape, d_out)


def maxout_reference(x, weight, bias, d_out, pool_size):
    y = jnp.einsum("...i,oi->...o", x, weight) + bias
    y = y.reshape(*x.shape[:-1], d_out, pool_size)
    return y.max(axis=-1)


if __name__ == "__main__":
    # Small shapes consistent with the module: batch=2, seq=8, d_in=128, d_out=128, pool=4
    d_in, d_out, pool_size = 128, 128, 4
    batch, seq = 2, 8

    key = jax.random.PRNGKey(0)
    kx, kw, kb, kx2 = jax.random.split(key, 4)

    # Deterministic parameter init (PyTorch Linear-style uniform bound 1/sqrt(d_in)).
    bound = 1.0 / (d_in ** 0.5)
    weight = jax.random.uniform(kw, (d_out * pool_size, d_in), jnp.float32, -bound, bound)
    bias = jax.random.uniform(kb, (d_out * pool_size,), jnp.float32, -bound, bound)

    x = jax.random.normal(kx, (batch, seq, d_in), jnp.float32)
    ref = maxout_reference(x, weight, bias, d_out, pool_size)

    # f32 compute path (tight tolerance).
    out_f32 = jax.block_until_ready(maxout_pallas(x, weight, bias, d_out, pool_size))
    assert out_f32.shape == (batch, seq, d_out)
    assert jnp.allclose(out_f32, ref, atol=1e-4, rtol=1e-4), "f32 mismatch vs reference"

    # bf16 compute path (bf16-native MXU; f32 accumulation), looser tolerance.
    out_bf16 = jax.block_until_ready(
        maxout_pallas(x, weight, bias, d_out, pool_size, compute_dtype=jnp.bfloat16))
    assert out_bf16.shape == (batch, seq, d_out)
    assert jnp.allclose(out_bf16, ref, atol=5e-2, rtol=5e-2), "bf16 mismatch vs reference"

    # Ragged-M path: leading dims not a multiple of the tile -> wrapper padding is exercised.
    x_odd = jax.random.normal(kx2, (batch, 5, d_in), jnp.float32)
    ref_odd = maxout_reference(x_odd, weight, bias, d_out, pool_size)
    out_odd = jax.block_until_ready(maxout_pallas(x_odd, weight, bias, d_out, pool_size))
    assert out_odd.shape == (batch, 5, d_out)
    assert jnp.allclose(out_odd, ref_odd, atol=1e-4, rtol=1e-4), "ragged-M mismatch vs reference"

    print("KERNEL_OK")
</pallas_src>

<mosaic_0001>
module attributes {stable_mosaic.version = 11 : i64} {
  func.func @_maxout_kernel(%arg0: i32, %arg1: i32, %arg2: memref<16x128xf32, #tpu.memory_space<vmem>>, %arg3: memref<1x128x512xf32, #tpu.memory_space<vmem>>, %arg4: memref<1x1x512xf32, #tpu.memory_space<vmem>>, %arg5: memref<16x128xf32, #tpu.memory_space<vmem>>) attributes {dimension_semantics = [#tpu.dimension_semantics<parallel>, #tpu.dimension_semantics<parallel>], iteration_bounds = array<i64: 1, 1>, scalar_prefetch = 0 : i64, scratch_operands = 0 : i64, tpu.core_type = #tpu.core_type<tc>, window_params = [{transform_indices = @transform_0, window_bounds = array<i64: 16, 128>}, {transform_indices = @transform_1, window_bounds = array<i64: 1, 128, 512>}, {transform_indices = @transform_2, window_bounds = array<i64: 1, 1, 512>}, {transform_indices = @transform_3, window_bounds = array<i64: 16, 128>}]} {
    %c0 = arith.constant 0 : index
    %c0_0 = arith.constant 0 : index
    %0 = vector.load %arg2[%c0, %c0_0] : memref<16x128xf32, #tpu.memory_space<vmem>>, vector<16x128xf32>
    %c0_1 = arith.constant 0 : index
    %c0_2 = arith.constant 0 : index
    %c0_3 = arith.constant 0 : index
    %1 = vector.load %arg3[%c0_1, %c0_2, %c0_3] : memref<1x128x512xf32, #tpu.memory_space<vmem>>, vector<1x128x512xf32>
    %2 = vector.shape_cast %1 : vector<1x128x512xf32> to vector<128x512xf32>
    %cst = arith.constant dense<0.000000e+00> : vector<16x512xf32>
    %3 = tpu.matmul %0, %2, %cst {dimension_numbers = #tpu.dot_dimension_numbers<[1], [0], [0], [1], [0, 0, 1, 1], [], []>} : vector<16x128xf32>, vector<128x512xf32>, vector<16x512xf32> -> vector<16x512xf32>
    %c0_4 = arith.constant 0 : index
    %c0_5 = arith.constant 0 : index
    %c0_6 = arith.constant 0 : index
    %4 = vector.load %arg4[%c0_4, %c0_5, %c0_6] : memref<1x1x512xf32, #tpu.memory_space<vmem>>, vector<1x1x512xf32>
    %5 = vector.shape_cast %4 : vector<1x1x512xf32> to vector<1x512xf32>
    %6 = vector.broadcast %5 : vector<1x512xf32> to vector<16x512xf32>
    %7 = arith.addf %3, %6 : vector<16x512xf32>
    %8 = vector.extract_strided_slice %7 {offsets = [0, 0], sizes = [16, 128], strides = [1, 1]} : vector<16x512xf32> to vector<16x128xf32>
    %9 = vector.extract_strided_slice %7 {offsets = [0, 128], sizes = [16, 128], strides = [1, 1]} : vector<16x512xf32> to vector<16x128xf32>
    %10 = arith.maximumf %8, %9 : vector<16x128xf32>
    %11 = vector.extract_strided_slice %7 {offsets = [0, 256], sizes = [16, 128], strides = [1, 1]} : vector<16x512xf32> to vector<16x128xf32>
    %12 = arith.maximumf %10, %11 : vector<16x128xf32>
    %13 = vector.extract_strided_slice %7 {offsets = [0, 384], sizes = [16, 128], strides = [1, 1]} : vector<16x512xf32> to vector<16x128xf32>
    %14 = arith.maximumf %12, %13 : vector<16x128xf32>
    %c0_7 = arith.constant 0 : index
    %c0_8 = arith.constant 0 : index
    %15 = vector.load %arg5[%c0_7, %c0_8] : memref<16x128xf32, #tpu.memory_space<vmem>>, vector<16x128xf32>
    tpu.vector_store %arg5[%c0_7, %c0_8], %14 {strides = array<i32>} : memref<16x128xf32, #tpu.memory_space<vmem>>, vector<16x128xf32>,
    return
  }
  func.func @transform_0(%arg0: i32, %arg1: i32) -> (i32, i32) {
    %c0_i32 = arith.constant 0 : i32
    %c0_i32_0 = arith.constant 0 : i32
    return %arg0, %c0_i32 : i32, i32
  }
  func.func @transform_1(%arg0: i32, %arg1: i32) -> (i32, i32, i32) {
    %c0_i32 = arith.constant 0 : i32
    %c0_i32_0 = arith.constant 0 : i32
    %c0_i32_1 = arith.constant 0 : i32
    return %arg1, %c0_i32, %c0_i32_0 : i32, i32, i32
  }
  func.func @transform_2(%arg0: i32, %arg1: i32) -> (i32, i32, i32) {
    %c0_i32 = arith.constant 0 : i32
    %c0_i32_0 = arith.constant 0 : i32
    %c0_i32_1 = arith.constant 0 : i32
    return %arg1, %c0_i32, %c0_i32_0 : i32, i32, i32
  }
  func.func @transform_3(%arg0: i32, %arg1: i32) -> (i32, i32) {
    %c0_i32 = arith.constant 0 : i32
    return %arg0, %arg1 : i32, i32
  }
}

</mosaic_0001>

<llo_original>
// kernel: tpu_custom_call.1
$region0: #{tpu_custom_call.1}
  #allocation0 [shape = 'u32[]', space=smem, size = 0x4, offset = 0x4, fixed_abs, tag = 'smem constant byte address 0x4 - core index']
  #allocation1 [shape = 'u32[144,128]{1,0:T(1,128)}', space=vmem, size = 0x12000, scoped, tag = 'internal scratch']
  %s0 = inlined_call_operand.hbm [shape: f32[16,128], index: 0, kind: input, shape index: {}]
  %s1 = inlined_call_operand.hbm [shape: f32[1,128,512], index: 1, kind: input, shape index: {}]
  %s2 = inlined_call_operand.vmem [shape: f32[1,1,512], index: 2, kind: input, shape index: {}]
  %s3 = inlined_call_operand.hbm [shape: f32[16,128], index: 3, kind: output, shape index: {}]
  %s4 = sld [smem:[#allocation0]]
  $region30: #{tpu_custom_call.1} parent=0
    _
  %s6 = ssub.s32 1, %s4
  %s7 = scalar_select 0, %s6, %s4
  $region1: #{tpu_custom_call.1} parent=0
    #allocation2 [shape = 'u8[8192]{0}', space=vmem, size = 0x2000, scoped, tag = 'input window, operand 0, single buffered']
    #allocation3 [shape = 's32[1]{0}', space=sflag, size = 0x4, scoped, tag = 'scoped memory for tpu_custom_call.1']
    #allocation4 [shape = 's32[1]{0}', space=sflag, size = 0x4, scoped, tag = 'scoped memory for tpu_custom_call.1']
    #allocation5 [shape = 'u8[262144]{0}', space=vmem, size = 0x40000, scoped, tag = 'input window, operand 1, single buffered']
    #allocation6 [shape = 's32[1]{0}', space=sflag, size = 0x4, scoped, tag = 'scoped memory for tpu_custom_call.1']
    #allocation7 [shape = 'u8[8192]{0}', space=vmem, size = 0x2000, scoped, tag = 'output window, operand 0, single buffered']
    %8 = vsyncpa [#allocation3], 0
    %9 = vsyncpa [#allocation6], 0
    %10 = vsyncpa [#allocation4], 0
    // Predicated region
    $region2: #{tpu_custom_call.1} parent=1 // pred_check
      _
    $region3: #{tpu_custom_call.1} parent=1 // pred_check_branch
      %12 = sbr.rel (0) target = $region5
    $region4: #{tpu_custom_call.1} parent=1 // pred_region
      %s14 = ssub.s32 256, 256
      %15 = vsyncadd [#allocation3], %s14
      %s16 = sshll.u32 [#allocation2], 4
      %s17 = int_to_ptr.vmem [resolvable:$true] %s16
      %22 = dma.hbm_to_vmem [thread:$0]  %s0, 256, %s17, [#allocation3], 128, 128, 8
    $region5: #{tpu_custom_call.1} parent=1 // pred_fallthru
      _
    // Predicated region
    $region6: #{tpu_custom_call.1} parent=1 // pred_check
      _
    $region7: #{tpu_custom_call.1} parent=1 // pred_check_branch
      %24 = sbr.rel (0) target = $region9
    $region8: #{tpu_custom_call.1} parent=1 // pred_region
      %s26 = ssub.s32 8192, 8192
      %27 = vsyncadd [#allocation6], %s26
      %s28 = sshll.u32 [#allocation5], 4
      %s29 = int_to_ptr.vmem [resolvable:$true] %s28
      %34 = dma.hbm_to_vmem [thread:$0]  %s1, 8192, %s29, [#allocation6], 512, 512, 32
    $region9: #{tpu_custom_call.1} parent=1 // pred_fallthru
      _
    // Predicated region
    $region10: #{tpu_custom_call.1} parent=1 // pred_check
      _
    $region11: #{tpu_custom_call.1} parent=1 // pred_check_branch
      %36 = sbr.rel (0) target = $region13
    $region12: #{tpu_custom_call.1} parent=1 // pred_region
      _
    $region13: #{tpu_custom_call.1} parent=1 // pred_fallthru
      _
    // Predicated region
    $region14: #{tpu_custom_call.1} parent=1 // pred_check
      _
    $region15: #{tpu_custom_call.1} parent=1 // pred_check_branch
      %38 = sbr.rel (0) target = $region17
    $region16: #{tpu_custom_call.1} parent=1 // pred_region
      %39 = dma.done [#allocation3], 256
    $region17: #{tpu_custom_call.1} parent=1 // pred_fallthru
      _
    // Predicated region
    $region18: #{tpu_custom_call.1} parent=1 // pred_check
      _
    $region19: #{tpu_custom_call.1} parent=1 // pred_check_branch
      %41 = sbr.rel (0) target = $region21
    $region20: #{tpu_custom_call.1} parent=1 // pred_region
      %42 = dma.done [#allocation6], 8192
    $region21: #{tpu_custom_call.1} parent=1 // pred_fallthru
      _
    %v43 = vld [vmem:[#allocation2] sm:$0xff]
    %v44 = vld [vmem:[#allocation2 + $0x8] sm:$0xff]
    %v45 = vld [vmem:[#allocation5] sm:$0xff]
    %v46 = vld [vmem:[#allocation5 + $0x8] sm:$0xff]
    %v47 = vld [vmem:[#allocation5 + $0x10] sm:$0xff]
    %v48 = vld [vmem:[#allocation5 + $0x18] sm:$0xff]
    %v49 = vld [vmem:[#allocation5 + $0x20] sm:$0xff]
    %v50 = vld [vmem:[#allocation5 + $0x28] sm:$0xff]
    %v51 = vld [vmem:[#allocation5 + $0x30] sm:$0xff]
    %v52 = vld [vmem:[#allocation5 + $0x38] sm:$0xff]
    %v53 = vld [vmem:[#allocation5 + $0x40] sm:$0xff]
    %v54 = vld [vmem:[#allocation5 + $0x48] sm:$0xff]
    %v55 = vld [vmem:[#allocation5 + $0x50] sm:$0xff]
    %v56 = vld [vmem:[#allocation5 + $0x58] sm:$0xff]
    %v57 = vld [vmem:[#allocation5 + $0x60] sm:$0xff]
    %v58 = vld [vmem:[#allocation5 + $0x68] sm:$0xff]
    %v59 = vld [vmem:[#allocation5 + $0x70] sm:$0xff]
    %v60 = vld [vmem:[#allocation5 + $0x78] sm:$0xff]
    %v61 = vld [vmem:[#allocation5 + $0x80] sm:$0xff]
    %v62 = vld [vmem:[#allocation5 + $0x88] sm:$0xff]
    %v63 = vld [vmem:[#allocation5 + $0x90] sm:$0xff]
    %v64 = vld [vmem:[#allocation5 + $0x98] sm:$0xff]
    %v65 = vld [vmem:[#allocation5 + $0xa0] sm:$0xff]
    %v66 = vld [vmem:[#allocation5 + $0xa8] sm:$0xff]
    %v67 = vld [vmem:[#allocation5 + $0xb0] sm:$0xff]
    %v68 = vld [vmem:[#allocation5 + $0xb8] sm:$0xff]
    %v69 = vld [vmem:[#allocation5 + $0xc0] sm:$0xff]
    %v70 = vld [vmem:[#allocation5 + $0xc8] sm:$0xff]
    %v71 = vld [vmem:[#allocation5 + $0xd0] sm:$0xff]
    %v72 = vld [vmem:[#allocation5 + $0xd8] sm:$0xff]
    %v73 = vld [vmem:[#allocation5 + $0xe0] sm:$0xff]
    %v74 = vld [vmem:[#allocation5 + $0xe8] sm:$0xff]
    %v75 = vld [vmem:[#allocation5 + $0xf0] sm:$0xff]
    %v76 = vld [vmem:[#allocation5 + $0xf8] sm:$0xff]
    %v77 = vld [vmem:[#allocation5 + $0x100] sm:$0xff]
    %v78 = vld [vmem:[#allocation5 + $0x108] sm:$0xff]
    %v79 = vld [vmem:[#allocation5 + $0x110] sm:$0xff]
    %v80 = vld [vmem:[#allocation5 + $0x118] sm:$0xff]
    %v81 = vld [vmem:[#allocation5 + $0x120] sm:$0xff]
    %v82 = vld [vmem:[#allocation5 + $0x128] sm:$0xff]
    %v83 = vld [vmem:[#allocation5 + $0x130] sm:$0xff]
    %v84 = vld [vmem:[#allocation5 + $0x138] sm:$0xff]
    %v85 = vld [vmem:[#allocation5 + $0x140] sm:$0xff]
    %v86 = vld [vmem:[#allocation5 + $0x148] sm:$0xff]
    %v87 = vld [vmem:[#allocation5 + $0x150] sm:$0xff]
    %v88 = vld [vmem:[#allocation5 + $0x158] sm:$0xff]
    %v89 = vld [vmem:[#allocation5 + $0x160] sm:$0xff]
    %v90 = vld [vmem:[#allocation5 + $0x168] sm:$0xff]
    %v91 = vld [vmem:[#allocation5 + $0x170] sm:$0xff]
    %v92 = vld [vmem:[#allocation5 + $0x178] sm:$0xff]
    %v93 = vld [vmem:[#allocation5 + $0x180] sm:$0xff]
    %v94 = vld [vmem:[#allocation5 + $0x188] sm:$0xff]
    %v95 = vld [vmem:[#allocation5 + $0x190] sm:$0xff]
    %v96 = vld [vmem:[#allocation5 + $0x198] sm:$0xff]
    %v97 = vld [vmem:[#allocation5 + $0x1a0] sm:$0xff]
    %v98 = vld [vmem:[#allocation5 + $0x1a8] sm:$0xff]
    %v99 = vld [vmem:[#allocation5 + $0x1b0] sm:$0xff]
    %v100 = vld [vmem:[#allocation5 + $0x1b8] sm:$0xff]
    %v101 = vld [vmem:[#allocation5 + $0x1c0] sm:$0xff]
    %v102 = vld [vmem:[#allocation5 + $0x1c8] sm:$0xff]
    %v103 = vld [vmem:[#allocation5 + $0x1d0] sm:$0xff]
    %v104 = vld [vmem:[#allocation5 + $0x1d8] sm:$0xff]
    %v105 = vld [vmem:[#allocation5 + $0x1e0] sm:$0xff]
    %v106 = vld [vmem:[#allocation5 + $0x1e8] sm:$0xff]
    %v107 = vld [vmem:[#allocation5 + $0x1f0] sm:$0xff]
    %v108 = vld [vmem:[#allocation5 + $0x1f8] sm:$0xff]
    %v109 = vld [vmem:[%s2] sm:$0xf]
    %v111 = vlaneseq
    %v112 = vshrl.u32 %v111, 7
    %v113 = vsub.s32 0, %v112
    %v114 = vrot.slane %v109, %v113
    %v115 = vlaneseq
    %v116 = vshrl.u32 %v115, 7
    %v117 = vsub.s32 1, %v116
    %v118 = vrot.slane %v109, %v117
    %v119 = vlaneseq
    %v120 = vshrl.u32 %v119, 7
    %v121 = vsub.s32 2, %v120
    %v122 = vrot.slane %v109, %v121
    %v123 = vlaneseq
    %v124 = vshrl.u32 %v123, 7
    %v125 = vsub.s32 3, %v124
    %v126 = vrot.slane %v109, %v125
    %131 = vmatprep.subr.mxu0 %v46
    %132 = vmatpush1.msra.mxu0 %v45
    %133 = vmatprep.subr.mxu0 %v50
    %134 = vmatpush1.msra.mxu0 %v49
    %135 = vmatprep.subr.mxu0 %v54
    %136 = vmatpush1.msra.mxu0 %v53
    %137 = vmatprep.subr.mxu0 %v58
    %138 = vmatpush1.msra.mxu0 %v57
    %139 = vmatprep.subr.mxu0 %v62
    %140 = vmatpush1.msra.mxu0 %v61
    %141 = vmatprep.subr.mxu0 %v66
    %142 = vmatpush1.msra.mxu0 %v65
    %143 = vmatprep.subr.mxu0 %v70
    %144 = vmatpush1.msra.mxu0 %v69
    %145 = vmatprep.subr.mxu0 %v74
    %146 = vmatpush1.msra.mxu0 %v73
    %147 = vmatprep.subr.mxu0 %v78
    %148 = vmatpush1.msra.mxu0 %v77
    %149 = vmatprep.subr.mxu0 %v82
    %150 = vmatpush1.msra.mxu0 %v81
    %151 = vmatprep.subr.mxu0 %v86
    %152 = vmatpush1.msra.mxu0 %v85
    %153 = vmatprep.subr.mxu0 %v90
    %154 = vmatpush1.msra.mxu0 %v89
    %155 = vmatprep.subr.mxu0 %v94
    %156 = vmatpush1.msra.mxu0 %v93
    %157 = vmatprep.subr.mxu0 %v98
    %158 = vmatpush1.msra.mxu0 %v97
    %159 = vmatprep.subr.mxu0 %v102
    %160 = vmatpush1.msra.mxu0 %v101
    %161 = vmatprep.subr.mxu0 %v106
    %162 = vmatpush1.msra.mxu0 %v105
    %163 = vmatprep.subr.mxu0 0.0
    %164 = vmatpush1.msra.mxu0 0.0
    %165 = vmatprep.subr.mxu0 0.0
    %166 = vmatpush1.msra.mxu0 0.0
    %167 = vmatprep.subr.mxu0 0.0
    %168 = vmatpush1.msra.mxu0 0.0
    %169 = vmatprep.subr.mxu0 0.0
    %170 = vmatpush1.msra.mxu0 0.0
    %171 = vmatprep.subr.mxu0 0.0
    %172 = vmatpush1.msra.mxu0 0.0
    %173 = vmatprep.subr.mxu0 0.0
    %174 = vmatpush1.msra.mxu0 0.0
    %175 = vmatprep.subr.mxu0 0.0
    %176 = vmatpush1.msra.mxu0 0.0
    %177 = vmatprep.subr.mxu0 0.0
    %178 = vmatpush1.msra.mxu0 0.0
    %179 = vmatprep.subr.mxu0 0.0
    %180 = vmatpush1.msra.mxu0 0.0
    %181 = vmatprep.subr.mxu0 0.0
    %182 = vmatpush1.msra.mxu0 0.0
    %183 = vmatprep.subr.mxu0 0.0
    %184 = vmatpush1.msra.mxu0 0.0
    %185 = vmatprep.subr.mxu0 0.0
    %186 = vmatpush1.msra.mxu0 0.0
    %187 = vmatprep.subr.mxu0 0.0
    %188 = vmatpush1.msra.mxu0 0.0
    %189 = vmatprep.subr.mxu0 0.0
    %190 = vmatpush1.msra.mxu0 0.0
    %191 = vmatprep.subr.mxu0 0.0
    %192 = vmatpush1.msra.mxu0 0.0
    %193 = vmatprep.subr.mxu0 0.0
    %194 = vmatpush1.msra.mxu0 0.0
    %195 = vmatprep.mubr.f32.mxu0 0.0
    %196 = vmatmul.mubr.f32.gmra.mrb[0].mxu0 %v43
    %v197 = vpop.f32.mrb[0].mxu0
    %v198 = vadd.f32 %v114, %v197
    %v199 = vpop.f32.mrb[0].mxu0
    %v200 = vadd.f32 %v118, %v199
    %201 = vmatprep.mubr.f32.mxu0 0.0
    %202 = vmatmul.mubr.f32.gmra.mrb[0].mxu0 %v44
    %v203 = vpop.f32.mrb[0].mxu0
    %v204 = vadd.f32 %v114, %v203
    %v205 = vpop.f32.mrb[0].mxu0
    %v206 = vadd.f32 %v118, %v205
    %207 = vdwg.mxu0
    %208 = vmatprep.subr.mxu0 %v48
    %209 = vmatpush1.msra.mxu0 %v47
    %210 = vmatprep.subr.mxu0 %v52
    %211 = vmatpush1.msra.mxu0 %v51
    %212 = vmatprep.subr.mxu0 %v56
    %213 = vmatpush1.msra.mxu0 %v55
    %214 = vmatprep.subr.mxu0 %v60
    %215 = vmatpush1.msra.mxu0 %v59
    %216 = vmatprep.subr.mxu0 %v64
    %217 = vmatpush1.msra.mxu0 %v63
    %218 = vmatprep.subr.mxu0 %v68
    %219 = vmatpush1.msra.mxu0 %v67
    %220 = vmatprep.subr.mxu0 %v72
    %221 = vmatpush1.msra.mxu0 %v71
    %222 = vmatprep.subr.mxu0 %v76
    %223 = vmatpush1.msra.mxu0 %v75
    %224 = vmatprep.subr.mxu0 %v80
    %225 = vmatpush1.msra.mxu0 %v79
    %226 = vmatprep.subr.mxu0 %v84
    %227 = vmatpush1.msra.mxu0 %v83
    %228 = vmatprep.subr.mxu0 %v88
    %229 = vmatpush1.msra.mxu0 %v87
    %230 = vmatprep.subr.mxu0 %v92
    %231 = vmatpush1.msra.mxu0 %v91
    %232 = vmatprep.subr.mxu0 %v96
    %233 = vmatpush1.msra.mxu0 %v95
    %234 = vmatprep.subr.mxu0 %v100
    %235 = vmatpush1.msra.mxu0 %v99
    %236 = vmatprep.subr.mxu0 %v104
    %237 = vmatpush1.msra.mxu0 %v103
    %238 = vmatprep.subr.mxu0 %v108
    %239 = vmatpush1.msra.mxu0 %v107
    %240 = vmatprep.subr.mxu0 0.0
    %241 = vmatpush1.msra.mxu0 0.0
    %242 = vmatprep.subr.mxu0 0.0
    %243 = vmatpush1.msra.mxu0 0.0
    %244 = vmatprep.subr.mxu0 0.0
    %245 = vmatpush1.msra.mxu0 0.0
    %246 = vmatprep.subr.mxu0 0.0
    %247 = vmatpush1.msra.mxu0 0.0
    %248 = vmatprep.subr.mxu0 0.0
    %249 = vmatpush1.msra.mxu0 0.0
    %250 = vmatprep.subr.mxu0 0.0
    %251 = vmatpush1.msra.mxu0 0.0
    %252 = vmatprep.subr.mxu0 0.0
    %253 = vmatpush1.msra.mxu0 0.0
    %254 = vmatprep.subr.mxu0 0.0
    %255 = vmatpush1.msra.mxu0 0.0
    %256 = vmatprep.subr.mxu0 0.0
    %257 = vmatpush1.msra.mxu0 0.0
    %258 = vmatprep.subr.mxu0 0.0
    %259 = vmatpush1.msra.mxu0 0.0
    %260 = vmatprep.subr.mxu0 0.0
    %261 = vmatpush1.msra.mxu0 0.0
    %262 = vmatprep.subr.mxu0 0.0
    %263 = vmatpush1.msra.mxu0 0.0
    %264 = vmatprep.subr.mxu0 0.0
    %265 = vmatpush1.msra.mxu0 0.0
    %266 = vmatprep.subr.mxu0 0.0
    %267 = vmatpush1.msra.mxu0 0.0
    %268 = vmatprep.subr.mxu0 0.0
    %269 = vmatpush1.msra.mxu0 0.0
    %270 = vmatprep.subr.mxu0 0.0
    %271 = vmatpush1.msra.mxu0 0.0
    %272 = vmatprep.mubr.f32.mxu0 0.0
    %273 = vmatmul.mubr.f32.gmra.mrb[0].mxu0 %v43
    %v274 = vpop.f32.mrb[0].mxu0
    %v275 = vadd.f32 %v122, %v274
    %v276 = vpop.f32.mrb[0].mxu0
    %v277 = vadd.f32 %v126, %v276
    %278 = vmatprep.mubr.f32.mxu0 0.0
    %279 = vmatmul.mubr.f32.gmra.mrb[0].mxu0 %v44
    %v280 = vpop.f32.mrb[0].mxu0
    %v281 = vadd.f32 %v122, %v280
    %v282 = vpop.f32.mrb[0].mxu0
    %v283 = vadd.f32 %v126, %v282
    %284 = vdwg.mxu0
    %v285 = vmax.f32 %v198, %v200
    %v286 = vmax.f32 %v204, %v206
    %v287 = vmax.f32 %v285, %v275
    %v288 = vmax.f32 %v286, %v281
    %v289 = vmax.f32 %v287, %v277
    %v290 = vmax.f32 %v288, %v283
    %291 = vst [vmem:[#allocation7] sm:$0xff] %v289
    %292 = vst [vmem:[#allocation7 + $0x8] sm:$0xff] %v290
    // Predicated region
    $region22: #{tpu_custom_call.1} parent=1 // pred_check
      _
    $region23: #{tpu_custom_call.1} parent=1 // pred_check_branch
      %294 = sbr.rel (0) target = $region25
    $region24: #{tpu_custom_call.1} parent=1 // pred_region
      %s296 = ssub.s32 256, 256
      %297 = vsyncadd [#allocation4], %s296
      %s298 = sshll.u32 [#allocation7], 4
      %s299 = int_to_ptr.vmem [resolvable:$true] %s298
      %304 = dma.vmem_to_hbm [thread:$0]  %s299, 256, %s3, [#allocation4], 128, 128, 8
    $region25: #{tpu_custom_call.1} parent=1 // pred_fallthru
      _
    // Predicated region
    $region26: #{tpu_custom_call.1} parent=1 // pred_check
      _
    $region27: #{tpu_custom_call.1} parent=1 // pred_check_branch
      %306 = sbr.rel (0) target = $region29
    $region28: #{tpu_custom_call.1} parent=1 // pred_region
      %307 = dma.done [#allocation4], 256
    $region29: #{tpu_custom_call.1} parent=1 // pred_fallthru
      _
    %308 = vsyncpa [#allocation3], 1
    %309 = vsyncpa [#allocation6], 1
    %310 = vsyncpa [#allocation4], 1

</llo_original>
